<compile_context>
chip_gen: v6e
topology: v6e:2x2x1
jax: 0.10.0
libtpu: 0.0.40
codegen_flags: <defaults>
</compile_context>

<pallas_src>
import math

import jax
import jax.numpy as jnp
from jax import lax
from jax.experimental import pallas as pl
from jax.experimental.pallas import tpu as pltpu


# ----------------------------------------------------------------------------
# erf / GELU helpers (torch nn.GELU() default is the exact erf form)
# ----------------------------------------------------------------------------
_SQRT_HALF = 0.7071067811865476


def _erf_approx(x):
    # Abramowitz & Stegun 7.1.26 rational approximation (max abs err ~1.5e-7).
    a1, a2, a3, a4, a5 = (0.254829592, -0.284496736, 1.421413741,
                          -1.453152027, 1.061405429)
    p = 0.3275911
    sign = jnp.where(x >= 0.0, 1.0, -1.0)
    ax = jnp.abs(x)
    t = 1.0 / (1.0 + p * ax)
    poly = ((((a5 * t + a4) * t + a3) * t + a2) * t + a1) * t
    return sign * (1.0 - poly * jnp.exp(-ax * ax))


def _gelu(x):
    return 0.5 * x * (1.0 + _erf_approx(x * _SQRT_HALF))


def _round_up(x, m):
    return (x + m - 1) // m * m


# ----------------------------------------------------------------------------
# Kernel 1: fused linear  y = x @ W^T + b
# ----------------------------------------------------------------------------
def _linear_kernel(x_ref, wt_ref, b_ref, o_ref):
    acc = jnp.dot(x_ref[...], wt_ref[...], preferred_element_type=jnp.float32)
    o_ref[...] = (acc + b_ref[...]).astype(o_ref.dtype)


def linear(x2d, w, b, *, tm=256):
    M, cin = x2d.shape
    cout = w.shape[0]
    # large row tiles, never a full-M fallback; ragged tail padded up to one tile
    tm_eff = min(tm, _round_up(M, 8))
    Mp = _round_up(M, tm_eff)
    xin = x2d if Mp == M else jnp.pad(x2d, ((0, Mp - M), (0, 0)))
    wt = jnp.asarray(w).T                      # (cin, cout)
    b2 = jnp.asarray(b).reshape(1, cout)
    out = pl.pallas_call(
        _linear_kernel,
        out_shape=jax.ShapeDtypeStruct((Mp, cout), x2d.dtype),
        grid_spec=pltpu.PrefetchScalarGridSpec(
            num_scalar_prefetch=0,
            grid=(Mp // tm_eff,),
            in_specs=[
                pl.BlockSpec((tm_eff, cin), lambda i: (i, 0)),
                pl.BlockSpec((cin, cout), lambda i: (0, 0)),
                pl.BlockSpec((1, cout), lambda i: (0, 0)),
            ],
            out_specs=pl.BlockSpec((tm_eff, cout), lambda i: (i, 0)),
        ),
        compiler_params=pltpu.CompilerParams(dimension_semantics=("parallel",)),
    )(xin, wt, b2)
    return out if Mp == M else out[:M]


# ----------------------------------------------------------------------------
# Kernel 2: depthwise conv (stride 1) + LayerNorm(C, eps=1e-6) + GELU.
# Zero padding of the input is handled in-kernel via shifted-window accumulation
# into a VMEM scratch (no HBM pad round trip).
# ----------------------------------------------------------------------------
def _make_dw_kernel(H, W, C, K):
    pd = (K - 1) // 2

    def kern(x_ref, w_ref, b_ref, gamma_ref, beta_ref, o_ref, acc_ref):
        acc_ref[...] = jnp.zeros_like(acc_ref)
        for kh in range(K):
            for kw in range(K):
                dy, dx = kh - pd, kw - pd
                sy0, sy1 = max(0, dy), min(H, H + dy)       # source window
                sx0, sx1 = max(0, dx), min(W, W + dx)
                oy0, ox0 = max(0, -dy), max(0, -dx)         # dest window
                hlen, wlen = sy1 - sy0, sx1 - sx0
                tap = x_ref[0, sy0:sy1, sx0:sx1, :].astype(jnp.float32)
                wrow = w_ref[kh * K + kw:kh * K + kw + 1, :]          # (1, C)
                acc_ref[oy0:oy0 + hlen, ox0:ox0 + wlen, :] = (
                    acc_ref[oy0:oy0 + hlen, ox0:ox0 + wlen, :]
                    + tap * wrow[None, :, :])
        acc = acc_ref[...] + b_ref[...][None, :, :]
        # LayerNorm over the channel dim (biased variance, eps=1e-6, affine)
        mean = jnp.mean(acc, axis=-1, keepdims=True)
        var = jnp.mean(jnp.square(acc - mean), axis=-1, keepdims=True)
        xn = (acc - mean) * jax.lax.rsqrt(var + 1e-6)
        xn = xn * gamma_ref[...][None, :, :] + beta_ref[...][None, :, :]
        o_ref[0] = _gelu(xn).astype(o_ref.dtype)
    return kern


def dwconv_ln_gelu(x, w_dw, b_dw, ln_g, ln_b, *, K):
    # TODO(synk): for production H,W tile over rows with a (K-1)-row halo (manual
    # DMA) so per-step VMEM stays bounded on v7x; whole-image blocks are fine here.
    N, H, W, C = x.shape
    kern = _make_dw_kernel(H, W, C, K)
    return pl.pallas_call(
        kern,
        out_shape=jax.ShapeDtypeStruct((N, H, W, C), x.dtype),
        grid_spec=pltpu.PrefetchScalarGridSpec(
            num_scalar_prefetch=0,
            grid=(N,),
            in_specs=[
                pl.BlockSpec((1, H, W, C), lambda n: (n, 0, 0, 0)),
                pl.BlockSpec((K * K, C), lambda n: (0, 0)),
                pl.BlockSpec((1, C), lambda n: (0, 0)),
                pl.BlockSpec((1, C), lambda n: (0, 0)),
                pl.BlockSpec((1, C), lambda n: (0, 0)),
            ],
            out_specs=pl.BlockSpec((1, H, W, C), lambda n: (n, 0, 0, 0)),
            scratch_shapes=[pltpu.VMEM((H, W, C), jnp.float32)],
        ),
        compiler_params=pltpu.CompilerParams(dimension_semantics=("parallel",)),
    )(x, w_dw.reshape(K * K, C), b_dw.reshape(1, C),
      ln_g.reshape(1, C), ln_b.reshape(1, C))


# ----------------------------------------------------------------------------
# Kernel 3: DCNv3 deformable sampling core.
#   mask   = softmax(mask_logits) over the K*K kernel points (per query, group)
#   sample = zero-padded bilinear grid_sample of the grouped input_proj features
#   out    = sum_p mask_p * sample_p
# Expressed densely: weight of integer pixel (r, c) for sample (y, x) is
# relu(1-|y-r|)*relu(1-|x-c|); zero padding is implicit (out-of-frame pixels
# simply get no weight).  Per group, the mask-weighted bilinear weights over a
# chunk of S image rows form an (tq, S*W) matrix that is matmul'ed against the
# flattened (S*W, gc) feature rows, accumulated over chunks with lax.fori_loop.
# ----------------------------------------------------------------------------
def _pick_q_tile(Q, limit=256):
    if Q <= limit:
        return Q
    for t in range(limit, 7, -8):
        if Q % t == 0:
            return t
    return Q


def _pick_row_chunk(H, W, target=1024):
    best = 1
    for s in range(1, H + 1):
        if H % s == 0 and s * W <= target and (s * W) % 8 == 0:
            best = s
    if best == 1 and (W % 8) != 0:
        for s in range(1, H + 1):
            if H % s == 0 and s * W <= target:
                best = s
    return best


def _make_core_kernel(*, tq, P, G, gc, H, W, S, stride):
    SW = S * W
    nchunks = H // S
    fW = float(W)
    fS = float(stride)

    def kern(offx_ref, offy_ref, mask_ref, x_ref, o_ref):
        # query pixel positions for this Q tile (q = h*W + w, exact f32 decode)
        q_base = (pl.program_id(1) * tq).astype(jnp.float32)
        qf = q_base + lax.broadcasted_iota(jnp.int32, (tq, 1), 0).astype(jnp.float32)
        hq = jnp.floor((qf + 0.5) / fW)
        h_pos = hq * fS                                       # (tq, 1)
        w_pos = (qf - hq * fW) * fS

        # flattened (row, col) of each feature element within a chunk
        kf = lax.broadcasted_iota(jnp.int32, (1, SW), 1).astype(jnp.float32)
        rowk = jnp.floor((kf + 0.5) / fW)                     # (1, SW)
        colk = kf - rowk * fW

        for g in range(G):
            logits = mask_ref[0, :, g * P:(g + 1) * P]        # (tq, P)
            m = jnp.max(logits, axis=-1, keepdims=True)
            e = jnp.exp(logits - m)
            sm = e / jnp.sum(e, axis=-1, keepdims=True)       # softmax over points

            # offsets already carry the reference-grid constants + offset_scale
            px = w_pos + offx_ref[0, :, g * P:(g + 1) * P]    # (tq, P)
            py = h_pos + offy_ref[0, :, g * P:(g + 1) * P]

            # chunk-invariant: mask-weighted column bilinear weights, flattened
            mwx = [sm[:, p:p + 1] *
                   jnp.maximum(1.0 - jnp.abs(px[:, p:p + 1] - colk), 0.0)
                   for p in range(P)]                         # P x (tq, SW)

            def chunk(c, acc):
                base = (c * S).astype(jnp.float32)
                rows = rowk + base                            # (1, SW)
                a = jnp.zeros((tq, SW), jnp.float32)
                for p in range(P):
                    wy = jnp.maximum(1.0 - jnp.abs(py[:, p:p + 1] - rows), 0.0)
                    a = a + mwx[p] * wy                       # (tq, SW)
                start = pl.multiple_of(c * SW, SW)
                feat = x_ref[0, pl.ds(start, SW),
                             pl.ds(g * gc, gc)].astype(jnp.float32)   # (SW, gc)
                return acc + jnp.dot(a, feat, preferred_element_type=jnp.float32)

            acc = lax.fori_loop(0, nchunks, chunk,
                                jnp.zeros((tq, gc), jnp.float32))
            # lane-dense output: the (1, tq, C) block is written back as a whole
            o_ref[0, :, g * gc:(g + 1) * gc] = acc.astype(o_ref.dtype)
    return kern


def dcnv3_core(x_proj, off_x, off_y, mask_logits, *, H, W, G, gc, P, stride, tq, S):
    # x_proj:      (N, Q, C)   flattened input_proj features (unpadded frame)
    # off_x/off_y: (N, Q, G*P) sampling offsets in (unpadded) pixel units,
    #                          with the reference-grid constants folded in
    # mask_logits: (N, Q, G*P) raw mask logits (softmaxed in-kernel)
    N, Q, C = x_proj.shape
    GP = G * P
    nqt = Q // tq
    kern = _make_core_kernel(tq=tq, P=P, G=G, gc=gc, H=H, W=W, S=S, stride=stride)
    return pl.pallas_call(
        kern,
        out_shape=jax.ShapeDtypeStruct((N, Q, C), x_proj.dtype),
        grid_spec=pltpu.PrefetchScalarGridSpec(
            num_scalar_prefetch=0,
            grid=(N, nqt),
            in_specs=[
                pl.BlockSpec((1, tq, GP), lambda n, q: (n, q, 0)),
                pl.BlockSpec((1, tq, GP), lambda n, q: (n, q, 0)),
                pl.BlockSpec((1, tq, GP), lambda n, q: (n, q, 0)),
                # full image features per n; constant block index across the Q
                # axis -> DMA'd once per image and kept resident in VMEM
                pl.BlockSpec((1, Q, C), lambda n, q: (n, 0, 0)),
            ],
            out_specs=pl.BlockSpec((1, tq, C), lambda n, q: (n, q, 0)),
        ),
        compiler_params=pltpu.CompilerParams(
            dimension_semantics=("parallel", "parallel")),
    )(off_x, off_y, mask_logits, x_proj)


# ----------------------------------------------------------------------------
# Full DCNv3 forward
# ----------------------------------------------------------------------------
def dcnv3_forward(x, params, *, kernel_size, stride, pad, dilation, group,
                  dw_kernel_size, offset_scale):
    N, H, W, C = x.shape
    G = group
    gc = C // G
    Kh = Kw = kernel_size
    P = Kh * Kw
    M = N * H * W

    # stride-1-style config: offset/mask resolution (H, W) must equal output res
    Hp, Wp = H + 2 * pad, W + 2 * pad
    H_out = (Hp - (dilation * (Kh - 1) + 1)) // stride + 1
    W_out = (Wp - (dilation * (Kw - 1) + 1)) // stride + 1
    assert H_out == H and W_out == W, "only stride-1-compatible configs supported"
    Q = H * W

    # 1) input projection
    x_proj = linear(x.reshape(M, C), params['w_in'], params['b_in'])
    x_proj = x_proj.reshape(N, Q, C)

    # 2) depthwise conv + LN + GELU on the raw input
    x1 = dwconv_ln_gelu(x, params['w_dw'], params['b_dw'],
                        params['ln_g'], params['ln_b'], K=dw_kernel_size)

    # 3) fused offset + mask projection, cout padded to a multiple of 128
    com = G * P * 3
    com_pad = _round_up(com, 128)
    w_om = jnp.concatenate([params['w_off'], params['w_msk']], axis=0)
    b_om = jnp.concatenate([params['b_off'], params['b_msk']], axis=0)
    if com_pad != com:
        w_om = jnp.pad(w_om, ((0, com_pad - com), (0, 0)))
        b_om = jnp.pad(b_om, ((0, com_pad - com),))
    om = linear(x1.reshape(M, C), w_om, b_om).reshape(N, Q, com_pad)

    off = om[..., :G * P * 2].reshape(N, Q, G, P, 2)
    msk = om[..., G * P * 2:G * P * 3]                       # (N, Q, G*P)

    # fold the reference-grid / dilation-grid constants (dcnv3_core_pytorch) and
    # offset_scale into the offsets; kernel only adds the per-query pixel position.
    # kernel-point order p = i*Kh + j (i over width, j over height); offset last
    # dim is (dx, dy).  Coordinates are in the *unpadded* pixel frame (zero-pad
    # handled implicitly by the dense bilinear weights).
    cx = (dilation * (Kw - 1)) // 2
    cy = (dilation * (Kh - 1)) // 2
    base_x, base_y = [], []
    for i in range(Kw):
        for j in range(Kh):
            base_x.append(cx - pad + (i * dilation - cx) * offset_scale)
            base_y.append(cy - pad + (j * dilation - cy) * offset_scale)
    base_x = jnp.tile(jnp.asarray(base_x, jnp.float32), G)   # (G*P,)
    base_y = jnp.tile(jnp.asarray(base_y, jnp.float32), G)
    off_x = off[..., 0].reshape(N, Q, G * P) * offset_scale + base_x
    off_y = off[..., 1].reshape(N, Q, G * P) * offset_scale + base_y

    # 4) deformable sampling + mask-weighted aggregation  -> (N, Q, C)
    tq = _pick_q_tile(Q)
    S = _pick_row_chunk(H, W)
    core = dcnv3_core(x_proj, off_x, off_y, msk, H=H, W=W, G=G, gc=gc, P=P,
                      stride=stride, tq=tq, S=S)

    # center_feature_scale=False (module default) -> no rescale branch.

    # 5) output projection
    out = linear(core.reshape(M, C), params['w_out'], params['b_out'])
    return out.reshape(N, H, W, C)


# ----------------------------------------------------------------------------
if __name__ == "__main__":
    # small config consistent with the module (channels % group == 0,
    # group_channels a power of 2)
    channels, group, kernel_size, dw_kernel_size = 16, 4, 3, 3
    stride, pad, dilation, offset_scale = 1, 1, 1, 1.0
    N, H, W = 2, 8, 8
    C, G, P = channels, group, kernel_size * kernel_size

    key = jax.random.PRNGKey(0)
    ks = jax.random.split(key, 8)

    def xavier(k, shape):
        fan_out, fan_in = shape
        lim = math.sqrt(6.0 / (fan_in + fan_out))
        return jax.random.uniform(k, shape, jnp.float32, -lim, lim)

    params = dict(
        w_in=xavier(ks[0], (C, C)), b_in=jnp.zeros((C,), jnp.float32),
        w_out=xavier(ks[1], (C, C)), b_out=jnp.zeros((C,), jnp.float32),
        # NOTE: the PyTorch module zero-inits offset/mask; small random weights
        # are used here so the deformable-sampling path is actually exercised.
        w_off=0.05 * jax.random.normal(ks[2], (G * P * 2, C), jnp.float32),
        b_off=0.05 * jax.random.normal(ks[3], (G * P * 2,), jnp.float32),
        w_msk=0.05 * jax.random.normal(ks[4], (G * P, C), jnp.float32),
        b_msk=jnp.zeros((G * P,), jnp.float32),
        w_dw=0.1 * jax.random.normal(ks[5], (dw_kernel_size, dw_kernel_size, C),
                                     jnp.float32),
        b_dw=0.01 * jax.random.normal(ks[6], (C,), jnp.float32),
        ln_g=jnp.ones((C,), jnp.float32),
        ln_b=jnp.zeros((C,), jnp.float32),
    )

    x = jax.random.normal(ks[7], (N, H, W, C), jnp.float32)

    out = dcnv3_forward(x, params, kernel_size=kernel_size, stride=stride,
                        pad=pad, dilation=dilation, group=group,
                        dw_kernel_size=dw_kernel_size,
                        offset_scale=offset_scale)
    out = jax.block_until_ready(out)
    assert out.shape == (N, H, W, C)
    assert bool(jnp.all(jnp.isfinite(out)))
    print("KERNEL_OK")
</pallas_src>

<mosaic_0001>
module attributes {stable_mosaic.version = 11 : i64} {
  func.func @_linear_kernel(%arg0: i32, %arg1: memref<128x16xf32, #tpu.memory_space<vmem>>, %arg2: memref<16x16xf32, #tpu.memory_space<vmem>>, %arg3: memref<1x16xf32, #tpu.memory_space<vmem>>, %arg4: memref<128x16xf32, #tpu.memory_space<vmem>>) attributes {dimension_semantics = [#tpu.dimension_semantics<parallel>], iteration_bounds = array<i64: 1>, scalar_prefetch = 0 : i64, scratch_operands = 0 : i64, tpu.core_type = #tpu.core_type<tc>, window_params = [{transform_indices = @transform_0, window_bounds = array<i64: 128, 16>}, {pipeline_mode = #tpu.pipeline_mode<synchronous>, transform_indices = @transform_1, window_bounds = array<i64: 16, 16>}, {pipeline_mode = #tpu.pipeline_mode<synchronous>, transform_indices = @transform_2, window_bounds = array<i64: 1, 16>}, {transform_indices = @transform_3, window_bounds = array<i64: 128, 16>}]} {
    %c0 = arith.constant 0 : index
    %c0_0 = arith.constant 0 : index
    %0 = vector.load %arg1[%c0, %c0_0] : memref<128x16xf32, #tpu.memory_space<vmem>>, vector<128x16xf32>
    %c0_1 = arith.constant 0 : index
    %c0_2 = arith.constant 0 : index
    %1 = vector.load %arg2[%c0_1, %c0_2] : memref<16x16xf32, #tpu.memory_space<vmem>>, vector<16x16xf32>
    %cst = arith.constant dense<0.000000e+00> : vector<128x16xf32>
    %2 = tpu.matmul %0, %1, %cst {dimension_numbers = #tpu.dot_dimension_numbers<[1], [0], [0], [1], [0, 0, 1, 1], [], []>} : vector<128x16xf32>, vector<16x16xf32>, vector<128x16xf32> -> vector<128x16xf32>
    %c0_3 = arith.constant 0 : index
    %c0_4 = arith.constant 0 : index
    %3 = vector.load %arg3[%c0_3, %c0_4] : memref<1x16xf32, #tpu.memory_space<vmem>>, vector<1x16xf32>
    %4 = vector.broadcast %3 : vector<1x16xf32> to vector<128x16xf32>
    %5 = arith.addf %2, %4 : vector<128x16xf32>
    %c0_5 = arith.constant 0 : index
    %c0_6 = arith.constant 0 : index
    %6 = vector.load %arg4[%c0_5, %c0_6] : memref<128x16xf32, #tpu.memory_space<vmem>>, vector<128x16xf32>
    tpu.vector_store %arg4[%c0_5, %c0_6], %5 {strides = array<i32>} : memref<128x16xf32, #tpu.memory_space<vmem>>, vector<128x16xf32>,
    return
  }
  func.func @transform_0(%arg0: i32) -> (i32, i32) {
    %c0_i32 = arith.constant 0 : i32
    %c0_i32_0 = arith.constant 0 : i32
    return %arg0, %c0_i32 : i32, i32
  }
  func.func @transform_1(%arg0: i32) -> (i32, i32) {
    %c0_i32 = arith.constant 0 : i32
    %c0_i32_0 = arith.constant 0 : i32
    %c0_i32_1 = arith.constant 0 : i32
    return %c0_i32, %c0_i32_0 : i32, i32
  }
  func.func @transform_2(%arg0: i32) -> (i32, i32) {
    %c0_i32 = arith.constant 0 : i32
    %c0_i32_0 = arith.constant 0 : i32
    %c0_i32_1 = arith.constant 0 : i32
    return %c0_i32, %c0_i32_0 : i32, i32
  }
  func.func @transform_3(%arg0: i32) -> (i32, i32) {
    %c0_i32 = arith.constant 0 : i32
    %c0_i32_0 = arith.constant 0 : i32
    return %arg0, %c0_i32 : i32, i32
  }
}

</mosaic_0001>

<llo_original>
// kernel: tpu_custom_call.1
$region0: #{tpu_custom_call.1}
  #allocation0 [shape = 'u32[]', space=smem, size = 0x4, offset = 0x4, fixed_abs, tag = 'smem constant byte address 0x4 - core index']
  #allocation1 [shape = 'u32[144,128]{1,0:T(1,128)}', space=vmem, size = 0x12000, scoped, tag = 'internal scratch']
  %s0 = inlined_call_operand.vmem [shape: f32[128,16], index: 0, kind: input, shape index: {}]
  %s1 = inlined_call_operand.vmem [shape: f32[16,16], index: 1, kind: input, shape index: {}]
  %s2 = inlined_call_operand.vmem [shape: f32[1,16], index: 2, kind: input, shape index: {}]
  %s3 = inlined_call_operand.vmem [shape: f32[128,16], index: 3, kind: output, shape index: {}]
  %s4 = sld [smem:[#allocation0]]
  $region22: #{tpu_custom_call.1} parent=0
    _
  %s6 = ssub.s32 1, %s4
  %s7 = scalar_select 0, %s6, %s4
  // Predicated region
  $region2: #{tpu_custom_call.1} parent=0 // pred_check
    _
  $region3: #{tpu_custom_call.1} parent=0 // pred_check_branch
    %9 = sbr.rel (0) target = $region5
  $region4: #{tpu_custom_call.1} parent=0 // pred_region
    _
  $region5: #{tpu_custom_call.1} parent=0 // pred_fallthru
    _
  // Predicated region
  $region6: #{tpu_custom_call.1} parent=0 // pred_check
    _
  $region7: #{tpu_custom_call.1} parent=0 // pred_check_branch
    %11 = sbr.rel (0) target = $region9
  $region8: #{tpu_custom_call.1} parent=0 // pred_region
    _
  $region9: #{tpu_custom_call.1} parent=0 // pred_fallthru
    _
  // Predicated region
  $region10: #{tpu_custom_call.1} parent=0 // pred_check
    _
  $region11: #{tpu_custom_call.1} parent=0 // pred_check_branch
    %13 = sbr.rel (0) target = $region13
  $region12: #{tpu_custom_call.1} parent=0 // pred_region
    _
  $region13: #{tpu_custom_call.1} parent=0 // pred_fallthru
    _
  %v14 = vld [vmem:[%s0] sm:$0xff]
  %v15 = vld [vmem:[%s0 + $0x8] sm:$0xff]
  %v16 = vld [vmem:[%s0 + $0x10] sm:$0xff]
  %v17 = vld [vmem:[%s0 + $0x18] sm:$0xff]
  %v18 = vld [vmem:[%s0 + $0x20] sm:$0xff]
  %v19 = vld [vmem:[%s0 + $0x28] sm:$0xff]
  %v20 = vld [vmem:[%s0 + $0x30] sm:$0xff]
  %v21 = vld [vmem:[%s0 + $0x38] sm:$0xff]
  %v22 = vld [vmem:[%s0 + $0x40] sm:$0xff]
  %v23 = vld [vmem:[%s0 + $0x48] sm:$0xff]
  %v24 = vld [vmem:[%s0 + $0x50] sm:$0xff]
  %v25 = vld [vmem:[%s0 + $0x58] sm:$0xff]
  %v26 = vld [vmem:[%s0 + $0x60] sm:$0xff]
  %v27 = vld [vmem:[%s0 + $0x68] sm:$0xff]
  %v28 = vld [vmem:[%s0 + $0x70] sm:$0xff]
  %v29 = vld [vmem:[%s0 + $0x78] sm:$0xff]
  %v30 = vld [vmem:[%s1] sm:$0xff]
  %v31 = vld [vmem:[%s1 + $0x8] sm:$0xff]
  %v32 = vld [vmem:[%s2] sm:$0x1]
  %v34 = vlaneseq
  %v35 = vshrl.u32 %v34, 7
  %v36 = vsub.s32 0, %v35
  %v37 = vrot.slane %v32, %v36
  %vm39 = vcmask 130048
  %v41 = vsel %vm39, %v14, 0
  %v44 = vsel %vm39, %v15, 0
  %v47 = vsel %vm39, %v16, 0
  %v50 = vsel %vm39, %v17, 0
  %v53 = vsel %vm39, %v18, 0
  %v56 = vsel %vm39, %v19, 0
  %v59 = vsel %vm39, %v20, 0
  %v62 = vsel %vm39, %v21, 0
  %v65 = vsel %vm39, %v22, 0
  %v68 = vsel %vm39, %v23, 0
  %v71 = vsel %vm39, %v24, 0
  %v74 = vsel %vm39, %v25, 0
  %v77 = vsel %vm39, %v26, 0
  %v80 = vsel %vm39, %v27, 0
  %v83 = vsel %vm39, %v28, 0
  %v86 = vsel %vm39, %v29, 0
  %88 = vmatprep.subr.mxu0 0.0
  %89 = vmatpush1.msra.mxu0 0.0
  %90 = vmatprep.subr.mxu0 0.0
  %91 = vmatpush1.msra.mxu0 0.0
  %92 = vmatprep.subr.mxu0 0.0
  %93 = vmatpush1.msra.mxu0 0.0
  %94 = vmatprep.subr.mxu0 0.0
  %95 = vmatpush1.msra.mxu0 0.0
  %96 = vmatprep.subr.mxu0 0.0
  %97 = vmatpush1.msra.mxu0 0.0
  %98 = vmatprep.subr.mxu0 0.0
  %99 = vmatpush1.msra.mxu0 0.0
  %100 = vmatprep.subr.mxu0 0.0
  %101 = vmatpush1.msra.mxu0 0.0
  %102 = vmatprep.subr.mxu0 0.0
  %103 = vmatpush1.msra.mxu0 0.0
  %104 = vmatprep.subr.mxu0 0.0
  %105 = vmatpush1.msra.mxu0 0.0
  %106 = vmatprep.subr.mxu0 0.0
  %107 = vmatpush1.msra.mxu0 0.0
  %108 = vmatprep.subr.mxu0 0.0
  %109 = vmatpush1.msra.mxu0 0.0
  %110 = vmatprep.subr.mxu0 0.0
  %111 = vmatpush1.msra.mxu0 0.0
  %112 = vmatprep.subr.mxu0 0.0
  %113 = vmatpush1.msra.mxu0 0.0
  %114 = vmatprep.subr.mxu0 0.0
  %115 = vmatpush1.msra.mxu0 0.0
  %116 = vmatprep.subr.mxu0 0.0
  %117 = vmatpush1.msra.mxu0 %v31
  %118 = vmatprep.subr.mxu0 0.0
  %119 = vmatpush1.msra.mxu0 %v30
  %120 = vmatprep.subr.mxu0 0.0
  %121 = vmatpush2.msra.mxu0 0.0
  %122 = vmatprep.subr.mxu0 0.0
  %123 = vmatpush2.msra.mxu0 0.0
  %124 = vmatprep.subr.mxu0 0.0
  %125 = vmatpush2.msra.mxu0 0.0
  %126 = vmatprep.subr.mxu0 0.0
  %127 = vmatpush2.msra.mxu0 0.0
  %128 = vmatprep.subr.mxu0 0.0
  %129 = vmatpush2.msra.mxu0 0.0
  %130 = vmatprep.subr.mxu0 0.0
  %131 = vmatpush2.msra.mxu0 0.0
  %132 = vmatprep.subr.mxu0 0.0
  %133 = vmatpush2.msra.mxu0 0.0
  %134 = vmatprep.subr.mxu0 0.0
  %135 = vmatpush2.msra.mxu0 0.0
  %136 = vmatprep.subr.mxu0 0.0
  %137 = vmatpush2.msra.mxu0 0.0
  %138 = vmatprep.subr.mxu0 0.0
  %139 = vmatpush2.msra.mxu0 0.0
  %140 = vmatprep.subr.mxu0 0.0
  %141 = vmatpush2.msra.mxu0 0.0
  %142 = vmatprep.subr.mxu0 0.0
  %143 = vmatpush2.msra.mxu0 0.0
  %144 = vmatprep.subr.mxu0 0.0
  %145 = vmatpush2.msra.mxu0 0.0
  %146 = vmatprep.subr.mxu0 0.0
  %147 = vmatpush2.msra.mxu0 0.0
  %148 = vmatprep.subr.mxu0 0.0
  %149 = vmatpush2.msra.mxu0 0.0
  %150 = vmatprep.subr.mxu0 0.0
  %151 = vmatpush2.msra.mxu0 0.0
  %152 = vmatprep.mubr.f32.mxu0 0.0
  %153 = vmatmul.mubr.f32.gmra.mxu0 %v41
  %v154 = vpop.f32.mrf.mxu0
  %v155 = vadd.f32 %v37, %v154
  %v156 = vpop.f32.mrf.mxu0
  %157 = vmatprep.mubr.f32.mxu0 0.0
  %158 = vmatmul.mubr.f32.gmra.mxu0 %v44
  %v159 = vpop.f32.mrf.mxu0
  %v160 = vadd.f32 %v37, %v159
  %v161 = vpop.f32.mrf.mxu0
  %162 = vmatprep.mubr.f32.mxu0 0.0
  %163 = vmatmul.mubr.f32.gmra.mxu0 %v47
  %v164 = vpop.f32.mrf.mxu0
  %v165 = vadd.f32 %v37, %v164
  %v166 = vpop.f32.mrf.mxu0
  %167 = vmatprep.mubr.f32.mxu0 0.0
  %168 = vmatmul.mubr.f32.gmra.mxu0 %v50
  %v169 = vpop.f32.mrf.mxu0
  %v170 = vadd.f32 %v37, %v169
  %v171 = vpop.f32.mrf.mxu0
  %172 = vmatprep.mubr.f32.mxu0 0.0
  %173 = vmatmul.mubr.f32.gmra.mxu0 %v53
  %v174 = vpop.f32.mrf.mxu0
  %v175 = vadd.f32 %v37, %v174
  %v176 = vpop.f32.mrf.mxu0
  %177 = vmatprep.mubr.f32.mxu0 0.0
  %178 = vmatmul.mubr.f32.gmra.mxu0 %v56
  %v179 = vpop.f32.mrf.mxu0
  %v180 = vadd.f32 %v37, %v179
  %v181 = vpop.f32.mrf.mxu0
  %182 = vmatprep.mubr.f32.mxu0 0.0
  %183 = vmatmul.mubr.f32.gmra.mxu0 %v59
  %v184 = vpop.f32.mrf.mxu0
  %v185 = vadd.f32 %v37, %v184
  %v186 = vpop.f32.mrf.mxu0
  %187 = vmatprep.mubr.f32.mxu0 0.0
  %188 = vmatmul.mubr.f32.gmra.mxu0 %v62
  %v189 = vpop.f32.mrf.mxu0
  %v190 = vadd.f32 %v37, %v189
  %v191 = vpop.f32.mrf.mxu0
  %192 = vmatprep.mubr.f32.mxu0 0.0
  %193 = vmatmul.mubr.f32.gmra.mxu0 %v65
  %v194 = vpop.f32.mrf.mxu0
  %v195 = vadd.f32 %v37, %v194
  %v196 = vpop.f32.mrf.mxu0
  %197 = vmatprep.mubr.f32.mxu0 0.0
  %198 = vmatmul.mubr.f32.gmra.mxu0 %v68
  %v199 = vpop.f32.mrf.mxu0
  %v200 = vadd.f32 %v37, %v199
  %v201 = vpop.f32.mrf.mxu0
  %202 = vmatprep.mubr.f32.mxu0 0.0
  %203 = vmatmul.mubr.f32.gmra.mxu0 %v71
  %v204 = vpop.f32.mrf.mxu0
  %v205 = vadd.f32 %v37, %v204
  %v206 = vpop.f32.mrf.mxu0
  %207 = vmatprep.mubr.f32.mxu0 0.0
  %208 = vmatmul.mubr.f32.gmra.mxu0 %v74
  %v209 = vpop.f32.mrf.mxu0
  %v210 = vadd.f32 %v37, %v209
  %v211 = vpop.f32.mrf.mxu0
  %212 = vmatprep.mubr.f32.mxu0 0.0
  %213 = vmatmul.mubr.f32.gmra.mxu0 %v77
  %v214 = vpop.f32.mrf.mxu0
  %v215 = vadd.f32 %v37, %v214
  %v216 = vpop.f32.mrf.mxu0
  %217 = vmatprep.mubr.f32.mxu0 0.0
  %218 = vmatmul.mubr.f32.gmra.mxu0 %v80
  %v219 = vpop.f32.mrf.mxu0
  %v220 = vadd.f32 %v37, %v219
  %v221 = vpop.f32.mrf.mxu0
  %222 = vmatprep.mubr.f32.mxu0 0.0
  %223 = vmatmul.mubr.f32.gmra.mxu0 %v83
  %v224 = vpop.f32.mrf.mxu0
  %v225 = vadd.f32 %v37, %v224
  %v226 = vpop.f32.mrf.mxu0
  %227 = vmatprep.mubr.f32.mxu0 0.0
  %228 = vmatmul.mubr.f32.gmra.mxu0 %v86
  %v229 = vpop.f32.mrf.mxu0
  %v230 = vadd.f32 %v37, %v229
  %v231 = vpop.f32.mrf.mxu0
  %232 = vdwg.mxu0
  %233 = vst.msk [vmem:[%s3] sm:$0xff] %vm39, %v155
  %234 = vst.msk [vmem:[%s3 + $0x8] sm:$0xff] %vm39, %v160
  %235 = vst.msk [vmem:[%s3 + $0x10] sm:$0xff] %vm39, %v165
  %236 = vst.msk [vmem:[%s3 + $0x18] sm:$0xff] %vm39, %v170
  %237 = vst.msk [vmem:[%s3 + $0x20] sm:$0xff] %vm39, %v175
  %238 = vst.msk [vmem:[%s3 + $0x28] sm:$0xff] %vm39, %v180
  %239 = vst.msk [vmem:[%s3 + $0x30] sm:$0xff] %vm39, %v185
  %240 = vst.msk [vmem:[%s3 + $0x38] sm:$0xff] %vm39, %v190
  %241 = vst.msk [vmem:[%s3 + $0x40] sm:$0xff] %vm39, %v195
  %242 = vst.msk [vmem:[%s3 + $0x48] sm:$0xff] %vm39, %v200
  %243 = vst.msk [vmem:[%s3 + $0x50] sm:$0xff] %vm39, %v205
  %244 = vst.msk [vmem:[%s3 + $0x58] sm:$0xff] %vm39, %v210
  %245 = vst.msk [vmem:[%s3 + $0x60] sm:$0xff] %vm39, %v215
  %246 = vst.msk [vmem:[%s3 + $0x68] sm:$0xff] %vm39, %v220
  %247 = vst.msk [vmem:[%s3 + $0x70] sm:$0xff] %vm39, %v225
  %248 = vst.msk [vmem:[%s3 + $0x78] sm:$0xff] %vm39, %v230
  // Predicated region
  $region14: #{tpu_custom_call.1} parent=0 // pred_check
    _
  $region15: #{tpu_custom_call.1} parent=0 // pred_check_branch
    %250 = sbr.rel (0) target = $region17
  $region16: #{tpu_custom_call.1} parent=0 // pred_region
    _
  $region17: #{tpu_custom_call.1} parent=0 // pred_fallthru
    _
  // Predicated region
  $region18: #{tpu_custom_call.1} parent=0 // pred_check
    _
  $region19: #{tpu_custom_call.1} parent=0 // pred_check_branch
    %252 = sbr.rel (0) target = $region21
  $region20: #{tpu_custom_call.1} parent=0 // pred_region
    _
  $region21: #{tpu_custom_call.1} parent=0 // pred_fallthru
    _

</llo_original>
